<compile_context>
chip_gen: v7x
topology: tpu7x:2x2x1
jax: 0.10.0
libtpu: 0.0.40
codegen_flags: <defaults>
</compile_context>

<pallas_src>
from functools import partial

import numpy as np
import jax
import jax.numpy as jnp
from jax.experimental import pallas as pl
from jax.experimental.pallas import tpu as pltpu


_RELU_AFTER = (0, 1, 3, 4)   # ReLU after original layers 1,2 (enc) and 1,2 (dec)


def _round_up(x, m):
    return (x + m - 1) // m * m


def _layer_dims(input_dim):
    return [(input_dim, 16), (16, 8), (8, 4),      # encoder
            (4, 8), (8, 16), (16, input_dim)]      # decoder


def _fuse_layers(params):
    """Fuse Linear(8,4) -> Linear(4,8) (no nonlinearity between) exactly.

    Returns a list of (W, b, relu_after) with W as (in, out), all numpy f32."""
    p = [(np.asarray(w, np.float32), np.asarray(b, np.float32)) for w, b in params]
    (w0, b0), (w1, b1), (w2, b2), (w3, b3), (w4, b4), (w5, b5) = p
    w23 = w2 @ w3                       # (8, 4) @ (4, 8) -> (8, 8)
    b23 = b2 @ w3 + b3                  # exact: (h@W2+b2)@W3+b3 == h@(W2W3)+(b2W3+b3)
    return [(w0, b0, True), (w1, b1, True), (w23, b23, True),
            (w4, b4, True), (w5, b5, False)]


def pack_params(params, input_dim):
    """Pack all (fused) layers into one f32 slab of [W_i ; b_i] row blocks.

    Row block i holds W_i (fin, fout) followed by one bias row; blocks are
    8-row aligned, lane axis padded to 128. Done ONCE in numpy (no XLA ops in
    the per-call path). Returns (slab, meta) with meta[i]=(row_off, fin, fout, relu)."""
    layers = _fuse_layers(params)
    offsets, rows = [], 0
    for (w, _, _) in layers:
        offsets.append(rows)
        rows = _round_up(rows + w.shape[0] + 1, 8)
    slab = np.zeros((_round_up(rows, 8), 128), np.float32)
    meta = []
    for (w, b, relu), off in zip(layers, offsets):
        fin, fout = w.shape
        slab[off:off + fin, :fout] = w
        slab[off + fin, :fout] = b
        meta.append((int(off), int(fin), int(fout), bool(relu)))
    return jnp.asarray(slab), tuple(meta)


def _make_kernel(meta, compute_dtype):
    """Fused 5-layer MLP on one (batch_tile, D) tile in natural (B, D) layout."""
    def kernel(x_ref, slab_ref, o_ref):
        h = x_ref[...].astype(jnp.float32)                       # (bt, D) f32
        for (off, fin, fout, relu) in meta:
            w = slab_ref[off:off + fin, 0:fout]                  # (fin, fout), static slice
            b = slab_ref[off + fin:off + fin + 1, 0:fout]        # (1, fout) f32 bias
            y = jnp.dot(h.astype(compute_dtype), w.astype(compute_dtype),
                        preferred_element_type=jnp.float32)      # f32 accumulate
            y = y + b                                            # f32 VPU (v5e-safe)
            if relu:
                y = jnp.maximum(y, 0.0)
            h = y                                                # activations stay f32
        o_ref[...] = h.astype(o_ref.dtype)
    return kernel


@partial(jax.jit, static_argnames=("meta", "batch_tile", "compute_dtype"))
def _forward(x, slab, *, meta, batch_tile, compute_dtype):
    B, D = x.shape
    grid = (pl.cdiv(B, batch_tile),)                             # no explicit pad

    # in + out blocks double-buffered (f32) + slab (double-buffered) + headroom.
    vmem_need = 4 * batch_tile * D * 4 + 2 * slab.size * 4 + (2 << 20)
    ck = dict(dimension_semantics=("parallel",))
    if vmem_need > (16 << 20):            # only raise when big tiles need it
        ck["vmem_limit_bytes"] = int(min(vmem_need, 48 << 20))   # v7x-safe cap

    return pl.pallas_call(
        _make_kernel(meta, compute_dtype),
        out_shape=jax.ShapeDtypeStruct((B, D), jnp.float32),
        grid_spec=pltpu.PrefetchScalarGridSpec(
            num_scalar_prefetch=0,
            grid=grid,
            in_specs=[pl.BlockSpec((batch_tile, D), lambda i: (i, 0)),
                      # loop-invariant slab: constant index_map -> stays resident
                      pl.BlockSpec(slab.shape, lambda i: (0, 0))],
            out_specs=pl.BlockSpec((batch_tile, D), lambda i: (i, 0)),
        ),
        compiler_params=pltpu.CompilerParams(**ck),
    )(x, slab)


def _auto_batch_tile(B, target=2048):
    # multiple of 128, capped at `target`, and >=4 grid steps for large B
    # (>=2 per TensorCore on v7x) so per-core pipelining actually overlaps.
    tile = min(target, _round_up(-(-B // 4), 128))
    return max(128, tile)


def autoencoder_forward(x, slab, meta, *, batch_tile=None,
                        compute_dtype=jnp.float32):
    """x: (B, input_dim) f32 in natural layout. slab/meta from pack_params."""
    B = x.shape[0]
    if batch_tile is None:
        batch_tile = _auto_batch_tile(B)
    else:
        batch_tile = max(128, _round_up(int(batch_tile), 128))
    return _forward(x, slab, meta=meta, batch_tile=batch_tile,
                    compute_dtype=compute_dtype)


def init_params(input_dim, key):
    """Deterministic PyTorch-style (Kaiming-uniform-ish) init; W is (in, out)."""
    params = []
    for (fin, fout) in _layer_dims(input_dim):
        key, kw, kb = jax.random.split(key, 3)
        bound = 1.0 / jnp.sqrt(jnp.float32(fin))
        w = jax.random.uniform(kw, (fin, fout), jnp.float32, -bound, bound)
        b = jax.random.uniform(kb, (fout,), jnp.float32, -bound, bound)
        params.append((w, b))
    return params


def reference_forward(x, params):
    h = x
    for layer_idx, (w, b) in enumerate(params):
        h = h @ w + b
        if layer_idx in _RELU_AFTER:
            h = jnp.maximum(h, 0.0)
    return h


if __name__ == "__main__":
    key = jax.random.PRNGKey(0)
    key, kx1, kx2 = jax.random.split(key, 3)

    input_dim = 32
    params = init_params(input_dim, key)
    slab, meta = pack_params(params, input_dim)    # packed ONCE, reused per call

    # --- Test 1: f32, B not a multiple of the tile (exercises the clipped
    #     trailing block), auto tile=128 -> 3 grid steps so DMAs pipeline. ----
    B1 = 300
    x1 = jax.random.normal(kx1, (B1, input_dim), jnp.float32)
    out1 = jax.block_until_ready(autoencoder_forward(x1, params and slab, meta))
    ref1 = reference_forward(x1, params)
    assert out1.shape == (B1, input_dim)
    assert jnp.allclose(out1, ref1, atol=1e-3, rtol=1e-3), \
        float(jnp.max(jnp.abs(out1 - ref1)))

    # --- Test 2: bf16 MXU operands (f32 activations/bias), auto tile=512 ->
    #     4 grid steps (2 per TensorCore on v7x). ----------------------------
    B2 = 2048
    x2 = jax.random.normal(kx2, (B2, input_dim), jnp.float32)
    out2 = jax.block_until_ready(
        autoencoder_forward(x2, slab, meta, compute_dtype=jnp.bfloat16))
    ref2 = reference_forward(x2, params)
    assert out2.shape == (B2, input_dim)
    assert jnp.allclose(out2, ref2, atol=1e-1, rtol=5e-2), \
        float(jnp.max(jnp.abs(out2 - ref2)))

    print("KERNEL_OK")
</pallas_src>

<mosaic_0001>
module attributes {stable_mosaic.version = 11 : i64} {
  func.func @kernel(%arg0: i32, %arg1: memref<128x32xf32, #tpu.memory_space<vmem>>, %arg2: memref<120x128xf32, #tpu.memory_space<vmem>>, %arg3: memref<128x32xf32, #tpu.memory_space<vmem>>) attributes {dimension_semantics = [#tpu.dimension_semantics<parallel>], iteration_bounds = array<i64: 3>, scalar_prefetch = 0 : i64, scratch_operands = 0 : i64, tpu.core_type = #tpu.core_type<tc>, window_params = [{transform_indices = @transform_0, window_bounds = array<i64: 128, 32>}, {pipeline_mode = #tpu.pipeline_mode<synchronous>, transform_indices = @transform_1, window_bounds = array<i64: 120, 128>}, {transform_indices = @transform_2, window_bounds = array<i64: 128, 32>}]} {
    %c0 = arith.constant 0 : index
    %c0_0 = arith.constant 0 : index
    %0 = vector.load %arg1[%c0, %c0_0] : memref<128x32xf32, #tpu.memory_space<vmem>>, vector<128x32xf32>
    %c0_1 = arith.constant 0 : index
    %c0_2 = arith.constant 0 : index
    %1 = vector.load %arg2[%c0_1, %c0_2] : memref<120x128xf32, #tpu.memory_space<vmem>>, vector<32x16xf32>
    %c32 = arith.constant 32 : index
    %c0_3 = arith.constant 0 : index
    %2 = vector.load %arg2[%c32, %c0_3] : memref<120x128xf32, #tpu.memory_space<vmem>>, vector<1x16xf32>
    %cst = arith.constant dense<0.000000e+00> : vector<128x16xf32>
    %3 = tpu.matmul %0, %1, %cst {dimension_numbers = #tpu.dot_dimension_numbers<[1], [0], [0], [1], [0, 0, 1, 1], [], []>} : vector<128x32xf32>, vector<32x16xf32>, vector<128x16xf32> -> vector<128x16xf32>
    %4 = vector.broadcast %2 : vector<1x16xf32> to vector<128x16xf32>
    %5 = arith.addf %3, %4 : vector<128x16xf32>
    %cst_4 = arith.constant 0.000000e+00 : f32
    %6 = vector.broadcast %cst_4 : f32 to vector<128x16xf32>
    %7 = arith.maximumf %5, %6 : vector<128x16xf32>
    %c40 = arith.constant 40 : index
    %c0_5 = arith.constant 0 : index
    %8 = vector.load %arg2[%c40, %c0_5] : memref<120x128xf32, #tpu.memory_space<vmem>>, vector<16x8xf32>
    %c56 = arith.constant 56 : index
    %c0_6 = arith.constant 0 : index
    %9 = vector.load %arg2[%c56, %c0_6] : memref<120x128xf32, #tpu.memory_space<vmem>>, vector<1x8xf32>
    %cst_7 = arith.constant dense<0.000000e+00> : vector<128x8xf32>
    %10 = tpu.matmul %7, %8, %cst_7 {dimension_numbers = #tpu.dot_dimension_numbers<[1], [0], [0], [1], [0, 0, 1, 1], [], []>} : vector<128x16xf32>, vector<16x8xf32>, vector<128x8xf32> -> vector<128x8xf32>
    %11 = vector.broadcast %9 : vector<1x8xf32> to vector<128x8xf32>
    %12 = arith.addf %10, %11 : vector<128x8xf32>
    %cst_8 = arith.constant 0.000000e+00 : f32
    %13 = vector.broadcast %cst_8 : f32 to vector<128x8xf32>
    %14 = arith.maximumf %12, %13 : vector<128x8xf32>
    %c64 = arith.constant 64 : index
    %c0_9 = arith.constant 0 : index
    %15 = vector.load %arg2[%c64, %c0_9] : memref<120x128xf32, #tpu.memory_space<vmem>>, vector<8x8xf32>
    %c72 = arith.constant 72 : index
    %c0_10 = arith.constant 0 : index
    %16 = vector.load %arg2[%c72, %c0_10] : memref<120x128xf32, #tpu.memory_space<vmem>>, vector<1x8xf32>
    %cst_11 = arith.constant dense<0.000000e+00> : vector<128x8xf32>
    %17 = tpu.matmul %14, %15, %cst_11 {dimension_numbers = #tpu.dot_dimension_numbers<[1], [0], [0], [1], [0, 0, 1, 1], [], []>} : vector<128x8xf32>, vector<8x8xf32>, vector<128x8xf32> -> vector<128x8xf32>
    %18 = vector.broadcast %16 : vector<1x8xf32> to vector<128x8xf32>
    %19 = arith.addf %17, %18 : vector<128x8xf32>
    %cst_12 = arith.constant 0.000000e+00 : f32
    %20 = vector.broadcast %cst_12 : f32 to vector<128x8xf32>
    %21 = arith.maximumf %19, %20 : vector<128x8xf32>
    %c80 = arith.constant 80 : index
    %c0_13 = arith.constant 0 : index
    %22 = vector.load %arg2[%c80, %c0_13] : memref<120x128xf32, #tpu.memory_space<vmem>>, vector<8x16xf32>
    %c88 = arith.constant 88 : index
    %c0_14 = arith.constant 0 : index
    %23 = vector.load %arg2[%c88, %c0_14] : memref<120x128xf32, #tpu.memory_space<vmem>>, vector<1x16xf32>
    %cst_15 = arith.constant dense<0.000000e+00> : vector<128x16xf32>
    %24 = tpu.matmul %21, %22, %cst_15 {dimension_numbers = #tpu.dot_dimension_numbers<[1], [0], [0], [1], [0, 0, 1, 1], [], []>} : vector<128x8xf32>, vector<8x16xf32>, vector<128x16xf32> -> vector<128x16xf32>
    %25 = vector.broadcast %23 : vector<1x16xf32> to vector<128x16xf32>
    %26 = arith.addf %24, %25 : vector<128x16xf32>
    %cst_16 = arith.constant 0.000000e+00 : f32
    %27 = vector.broadcast %cst_16 : f32 to vector<128x16xf32>
    %28 = arith.maximumf %26, %27 : vector<128x16xf32>
    %c96 = arith.constant 96 : index
    %c0_17 = arith.constant 0 : index
    %29 = vector.load %arg2[%c96, %c0_17] : memref<120x128xf32, #tpu.memory_space<vmem>>, vector<16x32xf32>
    %c112 = arith.constant 112 : index
    %c0_18 = arith.constant 0 : index
    %30 = vector.load %arg2[%c112, %c0_18] : memref<120x128xf32, #tpu.memory_space<vmem>>, vector<1x32xf32>
    %cst_19 = arith.constant dense<0.000000e+00> : vector<128x32xf32>
    %31 = tpu.matmul %28, %29, %cst_19 {dimension_numbers = #tpu.dot_dimension_numbers<[1], [0], [0], [1], [0, 0, 1, 1], [], []>} : vector<128x16xf32>, vector<16x32xf32>, vector<128x32xf32> -> vector<128x32xf32>
    %32 = vector.broadcast %30 : vector<1x32xf32> to vector<128x32xf32>
    %33 = arith.addf %31, %32 : vector<128x32xf32>
    %c0_20 = arith.constant 0 : index
    %c0_21 = arith.constant 0 : index
    %34 = vector.load %arg3[%c0_20, %c0_21] : memref<128x32xf32, #tpu.memory_space<vmem>>, vector<128x32xf32>
    tpu.vector_store %arg3[%c0_20, %c0_21], %33 {strides = array<i32>} : memref<128x32xf32, #tpu.memory_space<vmem>>, vector<128x32xf32>,
    return
  }
  func.func @transform_0(%arg0: i32) -> (i32, i32) {
    %c0_i32 = arith.constant 0 : i32
    %c0_i32_0 = arith.constant 0 : i32
    return %arg0, %c0_i32 : i32, i32
  }
  func.func @transform_1(%arg0: i32) -> (i32, i32) {
    %c0_i32 = arith.constant 0 : i32
    %c0_i32_0 = arith.constant 0 : i32
    %c0_i32_1 = arith.constant 0 : i32
    return %c0_i32, %c0_i32_0 : i32, i32
  }
  func.func @transform_2(%arg0: i32) -> (i32, i32) {
    %c0_i32 = arith.constant 0 : i32
    %c0_i32_0 = arith.constant 0 : i32
    return %arg0, %c0_i32 : i32, i32
  }
}

</mosaic_0001>

<llo_original>
// kernel: _forward.1
$region0: #{_forward.1}
  #allocation0 [shape = 'u32[]', space=smem, size = 0x4, offset = 0x4, fixed_abs, tag = 'smem constant byte address 0x4 - core index']
  #allocation1 [shape = 'u32[144,128]{1,0:T(1,128)}', space=vmem, size = 0x12000, scoped, tag = 'internal scratch']
  %s0 = inlined_call_operand.vmem [shape: f32[300,32], index: 0, kind: input, shape index: {}]
  %s1 = inlined_call_operand.vmem [shape: f32[120,128], index: 1, kind: input, shape index: {}]
  %s2 = inlined_call_operand.vmem [shape: f32[300,32], index: 2, kind: output, shape index: {}]
  %s3 = sld [smem:[#allocation0]]
  $region89: #{_forward.1} parent=0
    _
  %s5 = ssub.s32 1, %s3
  %s6 = scalar_select 0, %s5, %s3
  $region1: #{_forward.1} parent=0
    #allocation2 [shape = 'u8[131072]{0}', space=vmem, size = 0x20000, scoped, tag = 'output window, operand 0']
    loop: start=0, step=1, limit=5
    $region2: #{_forward.1} parent=1 // loop_pre_header
      _
    $region3: #{_forward.1} parent=1 // loop_header
      %s8 = sphi 0, %s12
      %p9 = scmp.ge.s32.totalorder %s8, 5
      %s18 = sphi 0, %s20
      %s21 = sphi 0, %s18
      %s22 = sphi 0, %s21
      %s38 = sphi 0, %s22
      %s42 = sphi 0, %s42
      %s44 = sphi 0, %s42
      %s45 = sphi 0, %s44
      %s59 = sphi 0, %s45
      %s65 = sphi 0, %s67
      %s68 = sphi 0, %s65
      %s69 = sphi 0, %s68
      %s85 = sphi 0, %s69
    $region4: #{_forward.1} parent=1 // loop_header_branch
      %11 = sbr.rel (%p9) target = $region8
    $region5: #{_forward.1} parent=1 // loop_body
      %s13 = ssub.s32 %s8, 1
      %s14 = ssub.s32 %s8, 2
      %s15 = sadd.s32 %s8, 1
      %s16 = ssub.s32 %s8, %s15
      %p17 = scmp.eq.s32.totalorder %s16, 0
      %s19 = sadd.s32 %s18, 1
      %s20 = scalar_select %p17, %s18, %s19
      %p23 = pneg %p17
      %p24 = scmp.eq.s32.totalorder %s8, 2
      %p25 = por %p23, %p24
      %p26 = scmp.ne.s32.totalorder %s18, %s21
      %p27 = scmp.eq.s32.totalorder %s8, 0
      %p28 = por %p26, %p27
      %p29 = scmp.ne.s32.totalorder %s18, %s21
      %p30 = scmp.eq.s32.totalorder %s13, 2
      %p31 = por %p29, %p30
      %p32 = scmp.ne.s32.totalorder %s21, %s22
      %p33 = scmp.eq.s32.totalorder %s13, 0
      %p34 = por %p32, %p33
      %p35 = scmp.ne.s32.totalorder %s21, %s22
      %p36 = scmp.eq.s32.totalorder %s14, 2
      %p37 = por %p35, %p36
      %p39 = scmp.ne.s32.totalorder %s22, %s38
      %p40 = scmp.eq.s32.totalorder %s14, 0
      %p41 = por %p39, %p40
      %s43 = sadd.s32 %s42, 1
      %p46 = scmp.eq.s32.totalorder %s8, 2
      %p47 = scmp.ne.s32.totalorder %s42, %s44
      %p48 = scmp.eq.s32.totalorder %s8, 0
      %p49 = por %p47, %p48
      %p50 = scmp.ne.s32.totalorder %s42, %s44
      %p51 = scmp.eq.s32.totalorder %s13, 2
      %p52 = por %p50, %p51
      %p53 = scmp.ne.s32.totalorder %s44, %s45
      %p54 = scmp.eq.s32.totalorder %s13, 0
      %p55 = por %p53, %p54
      %p56 = scmp.ne.s32.totalorder %s44, %s45
      %p57 = scmp.eq.s32.totalorder %s14, 2
      %p58 = por %p56, %p57
      %p60 = scmp.ne.s32.totalorder %s45, %s59
      %p61 = scmp.eq.s32.totalorder %s14, 0
      %p62 = por %p60, %p61
      %s63 = ssub.s32 %s8, %s15
      %p64 = scmp.eq.s32.totalorder %s63, 0
      %s66 = sadd.s32 %s65, 1
      %s67 = scalar_select %p64, %s65, %s66
      %p70 = pneg %p64
      %p71 = scmp.eq.s32.totalorder %s8, 2
      %p72 = por %p70, %p71
      %p73 = scmp.ne.s32.totalorder %s65, %s68
      %p74 = scmp.eq.s32.totalorder %s8, 0
      %p75 = por %p73, %p74
      %p76 = scmp.ne.s32.totalorder %s65, %s68
      %p77 = scmp.eq.s32.totalorder %s13, 2
      %p78 = por %p76, %p77
      %p79 = scmp.ne.s32.totalorder %s68, %s69
      %p80 = scmp.eq.s32.totalorder %s13, 0
      %p81 = por %p79, %p80
      %p82 = scmp.ne.s32.totalorder %s68, %s69
      %p83 = scmp.eq.s32.totalorder %s14, 2
      %p84 = por %p82, %p83
      %p86 = scmp.ne.s32.totalorder %s69, %s85
      %p87 = scmp.eq.s32.totalorder %s14, 0
      %p88 = por %p86, %p87
      %p89 = scmp.le.s32.totalorder 1, %s8
      %p90 = scmp.lt.s32.totalorder %s8, 4
      %p91 = pnand %p89, %p90
      %p92 = pneg %p91
      // Predicated region
      $region9: #{_forward.1} parent=5 // pred_check
        _
      $region10: #{_forward.1} parent=5 // pred_check_branch
        %94 = sbr.rel (%p91) target = $region12
      $region11: #{_forward.1} parent=5 // pred_region
        %s95 = ssub.s32 %s8, 1
        // Predicated region
        $region13: #{_forward.1} parent=11 // pred_check
          %p96 = pneg %p55
        $region14: #{_forward.1} parent=11 // pred_check_branch
          %98 = sbr.rel (%p96) target = $region16
        $region15: #{_forward.1} parent=11 // pred_region
          _
        $region16: #{_forward.1} parent=11 // pred_fallthru
          _
      $region12: #{_forward.1} parent=5 // pred_fallthru
        _
      %p99 = scmp.lt.s32.totalorder %s8, 3
      // Predicated region
      $region17: #{_forward.1} parent=5 // pred_check
        %p100 = pneg %p99
      $region18: #{_forward.1} parent=5 // pred_check_branch
        %102 = sbr.rel (%p100) target = $region20
      $region19: #{_forward.1} parent=5 // pred_region
        // Predicated region
        $region21: #{_forward.1} parent=19 // pred_check
          %p103 = pneg %p28
        $region22: #{_forward.1} parent=19 // pred_check_branch
          %105 = sbr.rel (%p103) target = $region24
        $region23: #{_forward.1} parent=19 // pred_region
          %s106 = smul.u32 16, %s8
          %s107 = ssub.s32 38, %s106
          %p108 = scmp.lt.s32.totalorder %s107, 16
          %s109 = scalar_select %p108, %s107, 16
          %s110 = smul.u32 128, %s109
          %p111 = scmp.lt.s32.totalorder %s106, 37
          %s112 = scalar_select %p111, %s106, 37
          %s113 = smul.addr %s112, 8
          %s114 = scalar_lea.vmem %s0, %s113
          %s115 = smul.u32 16, %s8
          %s116 = ssub.s32 38, %s115
          %p117 = scmp.lt.s32.totalorder %s116, 16
          %s118 = scalar_select %p117, %s116, 16
          %s119 = smul.u32 128, %s118
        $region24: #{_forward.1} parent=19 // pred_fallthru
          _
      $region20: #{_forward.1} parent=5 // pred_fallthru
        _
      %p120 = scmp.le.s32.totalorder 1, %s8
      %p121 = scmp.lt.s32.totalorder %s8, 4
      %p122 = pnand %p120, %p121
      %p123 = pneg %p122
      // Predicated region
      $region25: #{_forward.1} parent=5 // pred_check
        _
      $region26: #{_forward.1} parent=5 // pred_check_branch
        %125 = sbr.rel (%p122) target = $region28
      $region27: #{_forward.1} parent=5 // pred_region
        %s126 = ssub.s32 %s8, 1
        %s127 = smul.u32 16, %s13
        %s128 = ssub.s32 38, %s127
        %p129 = scmp.lt.s32.totalorder %s128, 16
        %s130 = scalar_select %p129, %s128, 16
        %s131 = smul.u32 128, %s130
        %p132 = scmp.lt.s32.totalorder %s127, 37
        %s133 = scalar_select %p132, %s127, 37
        %s134 = smul.addr %s133, 8
        %s135 = scalar_lea.vmem %s0, %s134
        %p136 = pneg %p34
        %p137 = pneg %p31
        %p138 = pneg %p55
        %p139 = pneg %p52
        %p140 = pneg %p81
        %p141 = pneg %p78
        %s142 = sand.u32 %s68, 1
        %s143 = sand.u32 %s68, 1
        %s144 = smul.addr %s143, 128
        %s145 = scalar_lea.vmem [#allocation2], %s144
        %s146 = smul.u32 16, %s13
        %s147 = ssub.s32 38, %s146
        %p148 = scmp.lt.s32.totalorder %s147, 16
        %s149 = scalar_select %p148, %s147, 16
        %s150 = smul.u32 128, %s149
        %p151 = scmp.lt.s32.totalorder %s146, 37
        %s152 = scalar_select %p151, %s146, 37
        %s153 = smul.addr %s152, 8
        %s154 = scalar_lea.vmem %s0, %s153
        %s155 = smul.u32 16, %s13
        %s156 = ssub.s32 38, %s155
        %p157 = scmp.lt.s32.totalorder %s156, 16
        %s158 = scalar_select %p157, %s156, 16
        %s159 = smul.u32 128, %s158
        %s160 = smul.u32 16, %s13
        %s161 = ssub.s32 38, %s160
        %p162 = scmp.lt.s32.totalorder %s161, 16
        %s163 = scalar_select %p162, %s161, 16
        %s164 = smul.u32 128, %s163
        %v165 = vld [vmem:[%s154] sm:$0xff]
        %v166 = vld [vmem:[%s154 + $0x8] sm:$0xff]
        %v167 = vld [vmem:[%s154 + $0x10] sm:$0xff]
        %v168 = vld [vmem:[%s154 + $0x18] sm:$0xff]
        %v169 = vld [vmem:[%s154 + $0x20] sm:$0xff]
        %v170 = vld [vmem:[%s154 + $0x28] sm:$0xff]
        %v171 = vld [vmem:[%s154 + $0x30] sm:$0xff]
        %v172 = vld [vmem:[%s154 + $0x38] sm:$0xff]
        %v173 = vld [vmem:[%s154 + $0x40] sm:$0xff]
        %v174 = vld [vmem:[%s154 + $0x48] sm:$0xff]
        %v175 = vld [vmem:[%s154 + $0x50] sm:$0xff]
        %v176 = vld [vmem:[%s154 + $0x58] sm:$0xff]
        %v177 = vld [vmem:[%s154 + $0x60] sm:$0xff]
        %v178 = vld [vmem:[%s154 + $0x68] sm:$0xff]
        %v179 = vld [vmem:[%s154 + $0x70] sm:$0xff]
        %v180 = vld [vmem:[%s154 + $0x78] sm:$0xff]
        %v181 = vld [vmem:[%s1] sm:$0xff]
        %v182 = vld [vmem:[%s1 + $0x8] sm:$0xff]
        %v183 = vld [vmem:[%s1 + $0x10] sm:$0xff]
        %v184 = vld [vmem:[%s1 + $0x18] sm:$0xff]
        %v185 = vld [vmem:[%s1 + $0x20] sm:$0x1]
        %v186 = vlaneseq
        %v187 = vshrl.u32 %v186, 7
        %v188 = vsub.s32 0, %v187
        %v189 = vrot.slane %v185, %v188
        %vm190 = vcmask 261120
        %v192 = vsel %vm190, %v165, 0
        %v195 = vsel %vm190, %v166, 0
        %v198 = vsel %vm190, %v167, 0
        %v201 = vsel %vm190, %v168, 0
        %v204 = vsel %vm190, %v169, 0
        %v207 = vsel %vm190, %v170, 0
        %v210 = vsel %vm190, %v171, 0
        %v213 = vsel %vm190, %v172, 0
        %v216 = vsel %vm190, %v173, 0
        %v219 = vsel %vm190, %v174, 0
        %v222 = vsel %vm190, %v175, 0
        %v225 = vsel %vm190, %v176, 0
        %v228 = vsel %vm190, %v177, 0
        %v231 = vsel %vm190, %v178, 0
        %v234 = vsel %vm190, %v179, 0
        %v237 = vsel %vm190, %v180, 0
        %239 = vmatprep.subr.mxu0 0.0
        %240 = vmatpush1.msra.mxu0 %v181
        %241 = vmatprep.subr.mxu0 0.0
        %242 = vmatpush1.msra.mxu0 %v182
        %243 = vmatprep.subr.mxu0 0.0
        %244 = vmatpush1.msra.mxu0 %v183
        %245 = vmatprep.subr.mxu0 0.0
        %246 = vmatpush1.msra.mxu0 %v184
        %247 = vmatprep.subr.mxu0 0.0
        %248 = vmatpush1.msra.mxu0 0.0
        %249 = vmatprep.subr.mxu0 0.0
        %250 = vmatpush1.msra.mxu0 0.0
        %251 = vmatprep.subr.mxu0 0.0
        %252 = vmatpush1.msra.mxu0 0.0
        %253 = vmatprep.subr.mxu0 0.0
        %254 = vmatpush1.msra.mxu0 0.0
        %255 = vmatprep.subr.mxu0 0.0
        %256 = vmatpush1.msra.mxu0 0.0
        %257 = vmatprep.subr.mxu0 0.0
        %258 = vmatpush1.msra.mxu0 0.0
        %259 = vmatprep.subr.mxu0 0.0
        %260 = vmatpush1.msra.mxu0 0.0
        %261 = vmatprep.subr.mxu0 0.0
        %262 = vmatpush1.msra.mxu0 0.0
        %263 = vmatprep.subr.mxu0 0.0
        %264 = vmatpush1.msra.mxu0 0.0
        %265 = vmatprep.subr.mxu0 0.0
        %266 = vmatpush1.msra.mxu0 0.0
        %267 = vmatprep.subr.mxu0 0.0
        %268 = vmatpush1.msra.mxu0 0.0
        %269 = vmatprep.subr.mxu0 0.0
        %270 = vmatpush1.msra.mxu0 0.0
        %271 = vmatprep.subr.mxu0 0.0
        %272 = vmatpush1.msra.mxu0 0.0
        %273 = vmatprep.subr.mxu0 0.0
        %274 = vmatpush1.msra.mxu0 0.0
        %275 = vmatprep.subr.mxu0 0.0
        %276 = vmatpush1.msra.mxu0 0.0
        %277 = vmatprep.subr.mxu0 0.0
        %278 = vmatpush1.msra.mxu0 0.0
        %279 = vmatprep.subr.mxu0 0.0
        %280 = vmatpush1.msra.mxu0 0.0
        %281 = vmatprep.subr.mxu0 0.0
        %282 = vmatpush1.msra.mxu0 0.0
        %283 = vmatprep.subr.mxu0 0.0
        %284 = vmatpush1.msra.mxu0 0.0
        %285 = vmatprep.subr.mxu0 0.0
        %286 = vmatpush1.msra.mxu0 0.0
        %287 = vmatprep.subr.mxu0 0.0
        %288 = vmatpush1.msra.mxu0 0.0
        %289 = vmatprep.subr.mxu0 0.0
        %290 = vmatpush1.msra.mxu0 0.0
        %291 = vmatprep.subr.mxu0 0.0
        %292 = vmatpush1.msra.mxu0 0.0
        %293 = vmatprep.subr.mxu0 0.0
        %294 = vmatpush1.msra.mxu0 0.0
        %295 = vmatprep.subr.mxu0 0.0
        %296 = vmatpush1.msra.mxu0 0.0
        %297 = vmatprep.subr.mxu0 0.0
        %298 = vmatpush1.msra.mxu0 0.0
        %299 = vmatprep.subr.mxu0 0.0
        %300 = vmatpush1.msra.mxu0 0.0
        %301 = vmatprep.subr.mxu0 0.0
        %302 = vmatpush1.msra.mxu0 0.0
        %303 = vmatprep.mubr.f32.mxu0 0.0
        %304 = vmatmul.mubr.f32.gmra.mrb[0].mxu0 %v192
        %v305 = vpop.f32.mrb[0].mxu0
        %v306 = vadd.f32 %v189, %v305
        %v307 = vpop.f32.mrb[0].mxu0
        %308 = vmatprep.mubr.f32.mxu0 0.0
        %309 = vmatmul.mubr.f32.gmra.mrb[0].mxu0 %v195
        %v310 = vpop.f32.mrb[0].mxu0
        %v311 = vadd.f32 %v189, %v310
        %v312 = vpop.f32.mrb[0].mxu0
        %313 = vmatprep.mubr.f32.mxu0 0.0
        %314 = vmatmul.mubr.f32.gmra.mrb[0].mxu0 %v198
        %v315 = vpop.f32.mrb[0].mxu0
        %v316 = vadd.f32 %v189, %v315
        %v317 = vpop.f32.mrb[0].mxu0
        %318 = vmatprep.mubr.f32.mxu0 0.0
        %319 = vmatmul.mubr.f32.gmra.mrb[0].mxu0 %v201
        %v320 = vpop.f32.mrb[0].mxu0
        %v321 = vadd.f32 %v189, %v320
        %v322 = vpop.f32.mrb[0].mxu0
        %323 = vmatprep.mubr.f32.mxu0 0.0
        %324 = vmatmul.mubr.f32.gmra.mrb[0].mxu0 %v204
        %v325 = vpop.f32.mrb[0].mxu0
        %v326 = vadd.f32 %v189, %v325
        %v327 = vpop.f32.mrb[0].mxu0
        %328 = vmatprep.mubr.f32.mxu0 0.0
        %329 = vmatmul.mubr.f32.gmra.mrb[0].mxu0 %v207
        %v330 = vpop.f32.mrb[0].mxu0
        %v331 = vadd.f32 %v189, %v330
        %v332 = vpop.f32.mrb[0].mxu0
        %333 = vmatprep.mubr.f32.mxu0 0.0
        %334 = vmatmul.mubr.f32.gmra.mrb[0].mxu0 %v210
        %v335 = vpop.f32.mrb[0].mxu0
        %v336 = vadd.f32 %v189, %v335
        %v337 = vpop.f32.mrb[0].mxu0
        %338 = vmatprep.mubr.f32.mxu0 0.0
        %339 = vmatmul.mubr.f32.gmra.mrb[0].mxu0 %v213
        %v340 = vpop.f32.mrb[0].mxu0
        %v341 = vadd.f32 %v189, %v340
        %v342 = vpop.f32.mrb[0].mxu0
        %343 = vmatprep.mubr.f32.mxu0 0.0
        %344 = vmatmul.mubr.f32.gmra.mrb[0].mxu0 %v216
        %v345 = vpop.f32.mrb[0].mxu0
        %v346 = vadd.f32 %v189, %v345
        %v347 = vpop.f32.mrb[0].mxu0
        %348 = vmatprep.mubr.f32.mxu0 0.0
        %349 = vmatmul.mubr.f32.gmra.mrb[0].mxu0 %v219
        %v350 = vpop.f32.mrb[0].mxu0
        %v351 = vadd.f32 %v189, %v350
        %v352 = vpop.f32.mrb[0].mxu0
        %353 = vmatprep.mubr.f32.mxu0 0.0
        %354 = vmatmul.mubr.f32.gmra.mrb[0].mxu0 %v222
        %v355 = vpop.f32.mrb[0].mxu0
        %v356 = vadd.f32 %v189, %v355
        %v357 = vpop.f32.mrb[0].mxu0
        %358 = vmatprep.mubr.f32.mxu0 0.0
        %359 = vmatmul.mubr.f32.gmra.mrb[0].mxu0 %v225
        %v360 = vpop.f32.mrb[0].mxu0
        %v361 = vadd.f32 %v189, %v360
        %v362 = vpop.f32.mrb[0].mxu0
        %363 = vmatprep.mubr.f32.mxu0 0.0
        %364 = vmatmul.mubr.f32.gmra.mrb[0].mxu0 %v228
        %v365 = vpop.f32.mrb[0].mxu0
        %v366 = vadd.f32 %v189, %v365
        %v367 = vpop.f32.mrb[0].mxu0
        %368 = vmatprep.mubr.f32.mxu0 0.0
        %369 = vmatmul.mubr.f32.gmra.mrb[0].mxu0 %v231
        %v370 = vpop.f32.mrb[0].mxu0
        %v371 = vadd.f32 %v189, %v370
        %v372 = vpop.f32.mrb[0].mxu0
        %373 = vmatprep.mubr.f32.mxu0 0.0
        %374 = vmatmul.mubr.f32.gmra.mrb[0].mxu0 %v234
        %v375 = vpop.f32.mrb[0].mxu0
        %v376 = vadd.f32 %v189, %v375
        %v377 = vpop.f32.mrb[0].mxu0
        %378 = vmatprep.mubr.f32.mxu0 0.0
        %379 = vmatmul.mubr.f32.gmra.mrb[0].mxu0 %v237
        %v380 = vpop.f32.mrb[0].mxu0
        %v381 = vadd.f32 %v189, %v380
        %v382 = vpop.f32.mrb[0].mxu0
        %383 = vdwg.mxu0
        %v384 = vmax.f32 %v306, 0.0
        %v385 = vmax.f32 %v311, 0.0
        %v386 = vmax.f32 %v316, 0.0
        %v387 = vmax.f32 %v321, 0.0
        %v388 = vmax.f32 %v326, 0.0
        %v389 = vmax.f32 %v331, 0.0
        %v390 = vmax.f32 %v336, 0.0
        %v391 = vmax.f32 %v341, 0.0
        %v392 = vmax.f32 %v346, 0.0
        %v393 = vmax.f32 %v351, 0.0
        %v394 = vmax.f32 %v356, 0.0
        %v395 = vmax.f32 %v361, 0.0
        %v396 = vmax.f32 %v366, 0.0
        %v397 = vmax.f32 %v371, 0.0
        %v398 = vmax.f32 %v376, 0.0
        %v399 = vmax.f32 %v381, 0.0
        %v400 = vld [vmem:[%s1 + $0x28] sm:$0xff]
        %v401 = vld [vmem:[%s1 + $0x30] sm:$0xff]
        %v402 = vld [vmem:[%s1 + $0x38] sm:$0x1]
        %v403 = vlaneseq
        %v404 = vshrl.u32 %v403, 7
        %v405 = vsub.s32 0, %v404
        %v406 = vrot.slane %v402, %v405
        %vm407 = vcmask 130048
        %v409 = vsel %vm407, %v384, 0
        %v412 = vsel %vm407, %v385, 0
        %v415 = vsel %vm407, %v386, 0
        %v418 = vsel %vm407, %v387, 0
        %v421 = vsel %vm407, %v388, 0
        %v424 = vsel %vm407, %v389, 0
        %v427 = vsel %vm407, %v390, 0
        %v430 = vsel %vm407, %v391, 0
        %v433 = vsel %vm407, %v392, 0
        %v436 = vsel %vm407, %v393, 0
        %v439 = vsel %vm407, %v394, 0
        %v442 = vsel %vm407, %v395, 0
        %v445 = vsel %vm407, %v396, 0
        %v448 = vsel %vm407, %v397, 0
        %v451 = vsel %vm407, %v398, 0
        %v454 = vsel %vm407, %v399, 0
        %456 = vmatprep.subr.mxu0 0.0
        %457 = vmatpush1.msra.mxu0 %v400
        %458 = vmatprep.subr.mxu0 0.0
        %459 = vmatpush1.msra.mxu0 %v401
        %460 = vmatprep.subr.mxu0 0.0
        %461 = vmatpush1.msra.mxu0 0.0
        %462 = vmatprep.subr.mxu0 0.0
        %463 = vmatpush1.msra.mxu0 0.0
        %464 = vmatprep.subr.mxu0 0.0
        %465 = vmatpush1.msra.mxu0 0.0
        %466 = vmatprep.subr.mxu0 0.0
        %467 = vmatpush1.msra.mxu0 0.0
        %468 = vmatprep.subr.mxu0 0.0
        %469 = vmatpush1.msra.mxu0 0.0
        %470 = vmatprep.subr.mxu0 0.0
        %471 = vmatpush1.msra.mxu0 0.0
        %472 = vmatprep.subr.mxu0 0.0
        %473 = vmatpush1.msra.mxu0 0.0
        %474 = vmatprep.subr.mxu0 0.0
        %475 = vmatpush1.msra.mxu0 0.0
        %476 = vmatprep.subr.mxu0 0.0
        %477 = vmatpush1.msra.mxu0 0.0
        %478 = vmatprep.subr.mxu0 0.0
        %479 = vmatpush1.msra.mxu0 0.0
        %480 = vmatprep.subr.mxu0 0.0
        %481 = vmatpush1.msra.mxu0 0.0
        %482 = vmatprep.subr.mxu0 0.0
        %483 = vmatpush1.msra.mxu0 0.0
        %484 = vmatprep.subr.mxu0 0.0
        %485 = vmatpush1.msra.mxu0 0.0
        %486 = vmatprep.subr.mxu0 0.0
        %487 = vmatpush1.msra.mxu0 0.0
        %488 = vmatprep.subr.mxu0 0.0
        %489 = vmatpush1.msra.mxu0 0.0
        %490 = vmatprep.subr.mxu0 0.0
        %491 = vmatpush1.msra.mxu0 0.0
        %492 = vmatprep.subr.mxu0 0.0
        %493 = vmatpush1.msra.mxu0 0.0
        %494 = vmatprep.subr.mxu0 0.0
        %495 = vmatpush1.msra.mxu0 0.0
        %496 = vmatprep.subr.mxu0 0.0
        %497 = vmatpush1.msra.mxu0 0.0
        %498 = vmatprep.subr.mxu0 0.0
        %499 = vmatpush1.msra.mxu0 0.0
        %500 = vmatprep.subr.mxu0 0.0
        %501 = vmatpush1.msra.mxu0 0.0
        %502 = vmatprep.subr.mxu0 0.0
        %503 = vmatpush1.msra.mxu0 0.0
        %504 = vmatprep.subr.mxu0 0.0
        %505 = vmatpush1.msra.mxu0 0.0
        %506 = vmatprep.subr.mxu0 0.0
        %507 = vmatpush1.msra.mxu0 0.0
        %508 = vmatprep.subr.mxu0 0.0
        %509 = vmatpush1.msra.mxu0 0.0
        %510 = vmatprep.subr.mxu0 0.0
        %511 = vmatpush1.msra.mxu0 0.0
        %512 = vmatprep.subr.mxu0 0.0
        %513 = vmatpush1.msra.mxu0 0.0
        %514 = vmatprep.subr.mxu0 0.0
        %515 = vmatpush1.msra.mxu0 0.0
        %516 = vmatprep.subr.mxu0 0.0
        %517 = vmatpush1.msra.mxu0 0.0
        %518 = vmatprep.subr.mxu0 0.0
        %519 = vmatpush1.msra.mxu0 0.0
        %520 = vmatprep.mubr.f32.mxu0 0.0
        %521 = vmatmul.mubr.f32.gmra.mrb[0].mxu0 %v409
        %v522 = vpop.f32.mrb[0].mxu0
        %v523 = vadd.f32 %v406, %v522
        %v524 = vpop.f32.mrb[0].mxu0
        %525 = vmatprep.mubr.f32.mxu0 0.0
        %526 = vmatmul.mubr.f32.gmra.mrb[0].mxu0 %v412
        %v527 = vpop.f32.mrb[0].mxu0
        %v528 = vadd.f32 %v406, %v527
        %v529 = vpop.f32.mrb[0].mxu0
        %530 = vmatprep.mubr.f32.mxu0 0.0
        %531 = vmatmul.mubr.f32.gmra.mrb[0].mxu0 %v415
        %v532 = vpop.f32.mrb[0].mxu0
        %v533 = vadd.f32 %v406, %v532
        %v534 = vpop.f32.mrb[0].mxu0
        %535 = vmatprep.mubr.f32.mxu0 0.0
        %536 = vmatmul.mubr.f32.gmra.mrb[0].mxu0 %v418
        %v537 = vpop.f32.mrb[0].mxu0
        %v538 = vadd.f32 %v406, %v537
        %v539 = vpop.f32.mrb[0].mxu0
        %540 = vmatprep.mubr.f32.mxu0 0.0
        %541 = vmatmul.mubr.f32.gmra.mrb[0].mxu0 %v421
        %v542 = vpop.f32.mrb[0].mxu0
        %v543 = vadd.f32 %v406, %v542
        %v544 = vpop.f32.mrb[0].mxu0
        %545 = vmatprep.mubr.f32.mxu0 0.0
        %546 = vmatmul.mubr.f32.gmra.mrb[0].mxu0 %v424
        %v547 = vpop.f32.mrb[0].mxu0
        %v548 = vadd.f32 %v406, %v547
        %v549 = vpop.f32.mrb[0].mxu0
        %550 = vmatprep.mubr.f32.mxu0 0.0
        %551 = vmatmul.mubr.f32.gmra.mrb[0].mxu0 %v427
        %v552 = vpop.f32.mrb[0].mxu0
        %v553 = vadd.f32 %v406, %v552
        %v554 = vpop.f32.mrb[0].mxu0
        %555 = vmatprep.mubr.f32.mxu0 0.0
        %556 = vmatmul.mubr.f32.gmra.mrb[0].mxu0 %v430
        %v557 = vpop.f32.mrb[0].mxu0
        %v558 = vadd.f32 %v406, %v557
        %v559 = vpop.f32.mrb[0].mxu0
        %560 = vmatprep.mubr.f32.mxu0 0.0
        %561 = vmatmul.mubr.f32.gmra.mrb[0].mxu0 %v433
        %v562 = vpop.f32.mrb[0].mxu0
        %v563 = vadd.f32 %v406, %v562
        %v564 = vpop.f32.mrb[0].mxu0
        %565 = vmatprep.mubr.f32.mxu0 0.0
        %566 = vmatmul.mubr.f32.gmra.mrb[0].mxu0 %v436
        %v567 = vpop.f32.mrb[0].mxu0
        %v568 = vadd.f32 %v406, %v567
        %v569 = vpop.f32.mrb[0].mxu0
        %570 = vmatprep.mubr.f32.mxu0 0.0
        %571 = vmatmul.mubr.f32.gmra.mrb[0].mxu0 %v439
        %v572 = vpop.f32.mrb[0].mxu0
        %v573 = vadd.f32 %v406, %v572
        %v574 = vpop.f32.mrb[0].mxu0
        %575 = vmatprep.mubr.f32.mxu0 0.0
        %576 = vmatmul.mubr.f32.gmra.mrb[0].mxu0 %v442
        %v577 = vpop.f32.mrb[0].mxu0
        %v578 = vadd.f32 %v406, %v577
        %v579 = vpop.f32.mrb[0].mxu0
        %580 = vmatprep.mubr.f32.mxu0 0.0
        %581 = vmatmul.mubr.f32.gmra.mrb[0].mxu0 %v445
        %v582 = vpop.f32.mrb[0].mxu0
        %v583 = vadd.f32 %v406, %v582
        %v584 = vpop.f32.mrb[0].mxu0
        %585 = vmatprep.mubr.f32.mxu0 0.0
        %586 = vmatmul.mubr.f32.gmra.mrb[0].mxu0 %v448
        %v587 = vpop.f32.mrb[0].mxu0
        %v588 = vadd.f32 %v406, %v587
        %v589 = vpop.f32.mrb[0].mxu0
        %590 = vmatprep.mubr.f32.mxu0 0.0
        %591 = vmatmul.mubr.f32.gmra.mrb[0].mxu0 %v451
        %v592 = vpop.f32.mrb[0].mxu0
        %v593 = vadd.f32 %v406, %v592
        %v594 = vpop.f32.mrb[0].mxu0
        %595 = vmatprep.mubr.f32.mxu0 0.0
        %596 = vmatmul.mubr.f32.gmra.mrb[0].mxu0 %v454
        %v597 = vpop.f32.mrb[0].mxu0
        %v598 = vadd.f32 %v406, %v597
        %v599 = vpop.f32.mrb[0].mxu0
        %600 = vdwg.mxu0
        %v601 = vmax.f32 %v523, 0.0
        %v602 = vmax.f32 %v528, 0.0
        %v603 = vmax.f32 %v533, 0.0
        %v604 = vmax.f32 %v538, 0.0
        %v605 = vmax.f32 %v543, 0.0
        %v606 = vmax.f32 %v548, 0.0
        %v607 = vmax.f32 %v553, 0.0
        %v608 = vmax.f32 %v558, 0.0
        %v609 = vmax.f32 %v563, 0.0
        %v610 = vmax.f32 %v568, 0.0
        %v611 = vmax.f32 %v573, 0.0
        %v612 = vmax.f32 %v578, 0.0
        %v613 = vmax.f32 %v583, 0.0
        %v614 = vmax.f32 %v588, 0.0
        %v615 = vmax.f32 %v593, 0.0
        %v616 = vmax.f32 %v598, 0.0
        %v617 = vld [vmem:[%s1 + $0x40] sm:$0xff]
        %v618 = vld [vmem:[%s1 + $0x48] sm:$0x1]
        %v619 = vlaneseq
        %v620 = vshrl.u32 %v619, 7
        %v621 = vsub.s32 0, %v620
        %v622 = vrot.slane %v618, %v621
        %vm623 = vcmask 64512
        %v625 = vsel %vm623, %v601, 0
        %v628 = vsel %vm623, %v602, 0
        %v631 = vsel %vm623, %v603, 0
        %v634 = vsel %vm623, %v604, 0
        %v637 = vsel %vm623, %v605, 0
        %v640 = vsel %vm623, %v606, 0
        %v643 = vsel %vm623, %v607, 0
        %v646 = vsel %vm623, %v608, 0
        %v649 = vsel %vm623, %v609, 0
        %v652 = vsel %vm623, %v610, 0
        %v655 = vsel %vm623, %v611, 0
        %v658 = vsel %vm623, %v612, 0
        %v661 = vsel %vm623, %v613, 0
        %v664 = vsel %vm623, %v614, 0
        %v667 = vsel %vm623, %v615, 0
        %v670 = vsel %vm623, %v616, 0
        %672 = vmatprep.subr.mxu0 0.0
        %673 = vmatpush1.msra.mxu0 %v617
        %674 = vmatprep.subr.mxu0 0.0
        %675 = vmatpush1.msra.mxu0 0.0
        %676 = vmatprep.subr.mxu0 0.0
        %677 = vmatpush1.msra.mxu0 0.0
        %678 = vmatprep.subr.mxu0 0.0
        %679 = vmatpush1.msra.mxu0 0.0
        %680 = vmatprep.subr.mxu0 0.0
        %681 = vmatpush1.msra.mxu0 0.0
        %682 = vmatprep.subr.mxu0 0.0
        %683 = vmatpush1.msra.mxu0 0.0
        %684 = vmatprep.subr.mxu0 0.0
        %685 = vmatpush1.msra.mxu0 0.0
        %686 = vmatprep.subr.mxu0 0.0
        %687 = vmatpush1.msra.mxu0 0.0
        %688 = vmatprep.subr.mxu0 0.0
        %689 = vmatpush1.msra.mxu0 0.0
        %690 = vmatprep.subr.mxu0 0.0
        %691 = vmatpush1.msra.mxu0 0.0
        %692 = vmatprep.subr.mxu0 0.0
        %693 = vmatpush1.msra.mxu0 0.0
        %694 = vmatprep.subr.mxu0 0.0
        %695 = vmatpush1.msra.mxu0 0.0
        %696 = vmatprep.subr.mxu0 0.0
        %697 = vmatpush1.msra.mxu0 0.0
        %698 = vmatprep.subr.mxu0 0.0
        %699 = vmatpush1.msra.mxu0 0.0
        %700 = vmatprep.subr.mxu0 0.0
        %701 = vmatpush1.msra.mxu0 0.0
        %702 = vmatprep.subr.mxu0 0.0
        %703 = vmatpush1.msra.mxu0 0.0
        %704 = vmatprep.subr.mxu0 0.0
        %705 = vmatpush1.msra.mxu0 0.0
        %706 = vmatprep.subr.mxu0 0.0
        %707 = vmatpush1.msra.mxu0 0.0
        %708 = vmatprep.subr.mxu0 0.0
        %709 = vmatpush1.msra.mxu0 0.0
        %710 = vmatprep.subr.mxu0 0.0
        %711 = vmatpush1.msra.mxu0 0.0
        %712 = vmatprep.subr.mxu0 0.0
        %713 = vmatpush1.msra.mxu0 0.0
        %714 = vmatprep.subr.mxu0 0.0
        %715 = vmatpush1.msra.mxu0 0.0
        %716 = vmatprep.subr.mxu0 0.0
        %717 = vmatpush1.msra.mxu0 0.0
        %718 = vmatprep.subr.mxu0 0.0
        %719 = vmatpush1.msra.mxu0 0.0
        %720 = vmatprep.subr.mxu0 0.0
        %721 = vmatpush1.msra.mxu0 0.0
        %722 = vmatprep.subr.mxu0 0.0
        %723 = vmatpush1.msra.mxu0 0.0
        %724 = vmatprep.subr.mxu0 0.0
        %725 = vmatpush1.msra.mxu0 0.0
        %726 = vmatprep.subr.mxu0 0.0
        %727 = vmatpush1.msra.mxu0 0.0
        %728 = vmatprep.subr.mxu0 0.0
        %729 = vmatpush1.msra.mxu0 0.0
        %730 = vmatprep.subr.mxu0 0.0
        %731 = vmatpush1.msra.mxu0 0.0
        %732 = vmatprep.subr.mxu0 0.0
        %733 = vmatpush1.msra.mxu0 0.0
        %734 = vmatprep.subr.mxu0 0.0
        %735 = vmatpush1.msra.mxu0 0.0
        %736 = vmatprep.mubr.f32.mxu0 0.0
        %737 = vmatmul.mubr.f32.gmra.mrb[0].mxu0 %v625
        %v738 = vpop.f32.mrb[0].mxu0
        %v739 = vadd.f32 %v622, %v738
        %v740 = vpop.f32.mrb[0].mxu0
        %741 = vmatprep.mubr.f32.mxu0 0.0
        %742 = vmatmul.mubr.f32.gmra.mrb[0].mxu0 %v628
        %v743 = vpop.f32.mrb[0].mxu0
        %v744 = vadd.f32 %v622, %v743
        %v745 = vpop.f32.mrb[0].mxu0
        %746 = vmatprep.mubr.f32.mxu0 0.0
        %747 = vmatmul.mubr.f32.gmra.mrb[0].mxu0 %v631
        %v748 = vpop.f32.mrb[0].mxu0
        %v749 = vadd.f32 %v622, %v748
        %v750 = vpop.f32.mrb[0].mxu0
        %751 = vmatprep.mubr.f32.mxu0 0.0
        %752 = vmatmul.mubr.f32.gmra.mrb[0].mxu0 %v634
        %v753 = vpop.f32.mrb[0].mxu0
        %v754 = vadd.f32 %v622, %v753
        %v755 = vpop.f32.mrb[0].mxu0
        %756 = vmatprep.mubr.f32.mxu0 0.0
        %757 = vmatmul.mubr.f32.gmra.mrb[0].mxu0 %v637
        %v758 = vpop.f32.mrb[0].mxu0
        %v759 = vadd.f32 %v622, %v758
        %v760 = vpop.f32.mrb[0].mxu0
        %761 = vmatprep.mubr.f32.mxu0 0.0
        %762 = vmatmul.mubr.f32.gmra.mrb[0].mxu0 %v640
        %v763 = vpop.f32.mrb[0].mxu0
        %v764 = vadd.f32 %v622, %v763
        %v765 = vpop.f32.mrb[0].mxu0
        %766 = vmatprep.mubr.f32.mxu0 0.0
        %767 = vmatmul.mubr.f32.gmra.mrb[0].mxu0 %v643
        %v768 = vpop.f32.mrb[0].mxu0
        %v769 = vadd.f32 %v622, %v768
        %v770 = vpop.f32.mrb[0].mxu0
        %771 = vmatprep.mubr.f32.mxu0 0.0
        %772 = vmatmul.mubr.f32.gmra.mrb[0].mxu0 %v646
        %v773 = vpop.f32.mrb[0].mxu0
        %v774 = vadd.f32 %v622, %v773
        %v775 = vpop.f32.mrb[0].mxu0
        %776 = vmatprep.mubr.f32.mxu0 0.0
        %777 = vmatmul.mubr.f32.gmra.mrb[0].mxu0 %v649
        %v778 = vpop.f32.mrb[0].mxu0
        %v779 = vadd.f32 %v622, %v778
        %v780 = vpop.f32.mrb[0].mxu0
        %781 = vmatprep.mubr.f32.mxu0 0.0
        %782 = vmatmul.mubr.f32.gmra.mrb[0].mxu0 %v652
        %v783 = vpop.f32.mrb[0].mxu0
        %v784 = vadd.f32 %v622, %v783
        %v785 = vpop.f32.mrb[0].mxu0
        %786 = vmatprep.mubr.f32.mxu0 0.0
        %787 = vmatmul.mubr.f32.gmra.mrb[0].mxu0 %v655
        %v788 = vpop.f32.mrb[0].mxu0
        %v789 = vadd.f32 %v622, %v788
        %v790 = vpop.f32.mrb[0].mxu0
        %791 = vmatprep.mubr.f32.mxu0 0.0
        %792 = vmatmul.mubr.f32.gmra.mrb[0].mxu0 %v658
        %v793 = vpop.f32.mrb[0].mxu0
        %v794 = vadd.f32 %v622, %v793
        %v795 = vpop.f32.mrb[0].mxu0
        %796 = vmatprep.mubr.f32.mxu0 0.0
        %797 = vmatmul.mubr.f32.gmra.mrb[0].mxu0 %v661
        %v798 = vpop.f32.mrb[0].mxu0
        %v799 = vadd.f32 %v622, %v798
        %v800 = vpop.f32.mrb[0].mxu0
        %801 = vmatprep.mubr.f32.mxu0 0.0
        %802 = vmatmul.mubr.f32.gmra.mrb[0].mxu0 %v664
        %v803 = vpop.f32.mrb[0].mxu0
        %v804 = vadd.f32 %v622, %v803
        %v805 = vpop.f32.mrb[0].mxu0
        %806 = vmatprep.mubr.f32.mxu0 0.0
        %807 = vmatmul.mubr.f32.gmra.mrb[0].mxu0 %v667
        %v808 = vpop.f32.mrb[0].mxu0
        %v809 = vadd.f32 %v622, %v808
        %v810 = vpop.f32.mrb[0].mxu0
        %811 = vmatprep.mubr.f32.mxu0 0.0
        %812 = vmatmul.mubr.f32.gmra.mrb[0].mxu0 %v670
        %v813 = vpop.f32.mrb[0].mxu0
        %v814 = vadd.f32 %v622, %v813
        %v815 = vpop.f32.mrb[0].mxu0
        %816 = vdwg.mxu0
        %v817 = vmax.f32 %v739, 0.0
        %v818 = vmax.f32 %v744, 0.0
        %v819 = vmax.f32 %v749, 0.0
        %v820 = vmax.f32 %v754, 0.0
        %v821 = vmax.f32 %v759, 0.0
        %v822 = vmax.f32 %v764, 0.0
        %v823 = vmax.f32 %v769, 0.0
        %v824 = vmax.f32 %v774, 0.0
        %v825 = vmax.f32 %v779, 0.0
        %v826 = vmax.f32 %v784, 0.0
        %v827 = vmax.f32 %v789, 0.0
        %v828 = vmax.f32 %v794, 0.0
        %v829 = vmax.f32 %v799, 0.0
        %v830 = vmax.f32 %v804, 0.0
        %v831 = vmax.f32 %v809, 0.0
        %v832 = vmax.f32 %v814, 0.0
        %v833 = vld [vmem:[%s1 + $0x50] sm:$0xff]
        %v834 = vld [vmem:[%s1 + $0x58] sm:$0x1]
        %v835 = vlaneseq
        %v836 = vshrl.u32 %v835, 7
        %v837 = vsub.s32 0, %v836
        %v838 = vrot.slane %v834, %v837
        %v840 = vsel %vm623, %v817, 0
        %v843 = vsel %vm623, %v818, 0
        %v846 = vsel %vm623, %v819, 0
        %v849 = vsel %vm623, %v820, 0
        %v852 = vsel %vm623, %v821, 0
        %v855 = vsel %vm623, %v822, 0
        %v858 = vsel %vm623, %v823, 0
        %v861 = vsel %vm623, %v824, 0
        %v864 = vsel %vm623, %v825, 0
        %v867 = vsel %vm623, %v826, 0
        %v870 = vsel %vm623, %v827, 0
        %v873 = vsel %vm623, %v828, 0
        %v876 = vsel %vm623, %v829, 0
        %v879 = vsel %vm623, %v830, 0
        %v882 = vsel %vm623, %v831, 0
        %v885 = vsel %vm623, %v832, 0
        %887 = vmatprep.subr.mxu0 0.0
        %888 = vmatpush1.msra.mxu0 %v833
        %889 = vmatprep.subr.mxu0 0.0
        %890 = vmatpush1.msra.mxu0 0.0
        %891 = vmatprep.subr.mxu0 0.0
        %892 = vmatpush1.msra.mxu0 0.0
        %893 = vmatprep.subr.mxu0 0.0
        %894 = vmatpush1.msra.mxu0 0.0
        %895 = vmatprep.subr.mxu0 0.0
        %896 = vmatpush1.msra.mxu0 0.0
        %897 = vmatprep.subr.mxu0 0.0
        %898 = vmatpush1.msra.mxu0 0.0
        %899 = vmatprep.subr.mxu0 0.0
        %900 = vmatpush1.msra.mxu0 0.0
        %901 = vmatprep.subr.mxu0 0.0
        %902 = vmatpush1.msra.mxu0 0.0
        %903 = vmatprep.subr.mxu0 0.0
        %904 = vmatpush1.msra.mxu0 0.0
        %905 = vmatprep.subr.mxu0 0.0
        %906 = vmatpush1.msra.mxu0 0.0
        %907 = vmatprep.subr.mxu0 0.0
        %908 = vmatpush1.msra.mxu0 0.0
        %909 = vmatprep.subr.mxu0 0.0
        %910 = vmatpush1.msra.mxu0 0.0
        %911 = vmatprep.subr.mxu0 0.0
        %912 = vmatpush1.msra.mxu0 0.0
        %913 = vmatprep.subr.mxu0 0.0
        %914 = vmatpush1.msra.mxu0 0.0
        %915 = vmatprep.subr.mxu0 0.0
        %916 = vmatpush1.msra.mxu0 0.0
        %917 = vmatprep.subr.mxu0 0.0
        %918 = vmatpush1.msra.mxu0 0.0
        %919 = vmatprep.subr.mxu0 0.0
        %920 = vmatpush1.msra.mxu0 0.0
        %921 = vmatprep.subr.mxu0 0.0
        %922 = vmatpush1.msra.mxu0 0.0
        %923 = vmatprep.subr.mxu0 0.0
        %924 = vmatpush1.msra.mxu0 0.0
        %925 = vmatprep.subr.mxu0 0.0
        %926 = vmatpush1.msra.mxu0 0.0
        %927 = vmatprep.subr.mxu0 0.0
        %928 = vmatpush1.msra.mxu0 0.0
        %929 = vmatprep.subr.mxu0 0.0
        %930 = vmatpush1.msra.mxu0 0.0
        %931 = vmatprep.subr.mxu0 0.0
        %932 = vmatpush1.msra.mxu0 0.0
        %933 = vmatprep.subr.mxu0 0.0
        %934 = vmatpush1.msra.mxu0 0.0
        %935 = vmatprep.subr.mxu0 0.0
        %936 = vmatpush1.msra.mxu0 0.0
        %937 = vmatprep.subr.mxu0 0.0
        %938 = vmatpush1.msra.mxu0 0.0
        %939 = vmatprep.subr.mxu0 0.0
        %940 = vmatpush1.msra.mxu0 0.0
        %941 = vmatprep.subr.mxu0 0.0
        %942 = vmatpush1.msra.mxu0 0.0
        %943 = vmatprep.subr.mxu0 0.0
        %944 = vmatpush1.msra.mxu0 0.0
        %945 = vmatprep.subr.mxu0 0.0
        %946 = vmatpush1.msra.mxu0 0.0
        %947 = vmatprep.subr.mxu0 0.0
        %948 = vmatpush1.msra.mxu0 0.0
        %949 = vmatprep.subr.mxu0 0.0
        %950 = vmatpush1.msra.mxu0 0.0
        %951 = vmatprep.mubr.f32.mxu0 0.0
        %952 = vmatmul.mubr.f32.gmra.mrb[0].mxu0 %v840
        %v953 = vpop.f32.mrb[0].mxu0
        %v954 = vadd.f32 %v838, %v953
        %v955 = vpop.f32.mrb[0].mxu0
        %956 = vmatprep.mubr.f32.mxu0 0.0
        %957 = vmatmul.mubr.f32.gmra.mrb[0].mxu0 %v843
        %v958 = vpop.f32.mrb[0].mxu0
        %v959 = vadd.f32 %v838, %v958
        %v960 = vpop.f32.mrb[0].mxu0
        %961 = vmatprep.mubr.f32.mxu0 0.0
        %962 = vmatmul.mubr.f32.gmra.mrb[0].mxu0 %v846
        %v963 = vpop.f32.mrb[0].mxu0
        %v964 = vadd.f32 %v838, %v963
        %v965 = vpop.f32.mrb[0].mxu0
        %966 = vmatprep.mubr.f32.mxu0 0.0
        %967 = vmatmul.mubr.f32.gmra.mrb[0].mxu0 %v849
        %v968 = vpop.f32.mrb[0].mxu0
        %v969 = vadd.f32 %v838, %v968
        %v970 = vpop.f32.mrb[0].mxu0
        %971 = vmatprep.mubr.f32.mxu0 0.0
        %972 = vmatmul.mubr.f32.gmra.mrb[0].mxu0 %v852
        %v973 = vpop.f32.mrb[0].mxu0
        %v974 = vadd.f32 %v838, %v973
        %v975 = vpop.f32.mrb[0].mxu0
        %976 = vmatprep.mubr.f32.mxu0 0.0
        %977 = vmatmul.mubr.f32.gmra.mrb[0].mxu0 %v855
        %v978 = vpop.f32.mrb[0].mxu0
        %v979 = vadd.f32 %v838, %v978
        %v980 = vpop.f32.mrb[0].mxu0
        %981 = vmatprep.mubr.f32.mxu0 0.0
        %982 = vmatmul.mubr.f32.gmra.mrb[0].mxu0 %v858
        %v983 = vpop.f32.mrb[0].mxu0
        %v984 = vadd.f32 %v838, %v983
        %v985 = vpop.f32.mrb[0].mxu0
        %986 = vmatprep.mubr.f32.mxu0 0.0
        %987 = vmatmul.mubr.f32.gmra.mrb[0].mxu0 %v861
        %v988 = vpop.f32.mrb[0].mxu0
        %v989 = vadd.f32 %v838, %v988
        %v990 = vpop.f32.mrb[0].mxu0
        %991 = vmatprep.mubr.f32.mxu0 0.0
        %992 = vmatmul.mubr.f32.gmra.mrb[0].mxu0 %v864
        %v993 = vpop.f32.mrb[0].mxu0
        %v994 = vadd.f32 %v838, %v993
        %v995 = vpop.f32.mrb[0].mxu0
        %996 = vmatprep.mubr.f32.mxu0 0.0
        %997 = vmatmul.mubr.f32.gmra.mrb[0].mxu0 %v867
        %v998 = vpop.f32.mrb[0].mxu0
        %v999 = vadd.f32 %v838, %v998
        %v1000 = vpop.f32.mrb[0].mxu0
        %1001 = vmatprep.mubr.f32.mxu0 0.0
        %1002 = vmatmul.mubr.f32.gmra.mrb[0].mxu0 %v870
        %v1003 = vpop.f32.mrb[0].mxu0
        %v1004 = vadd.f32 %v838, %v1003
        %v1005 = vpop.f32.mrb[0].mxu0
        %1006 = vmatprep.mubr.f32.mxu0 0.0
        %1007 = vmatmul.mubr.f32.gmra.mrb[0].mxu0 %v873
        %v1008 = vpop.f32.mrb[0].mxu0
        %v1009 = vadd.f32 %v838, %v1008
        %v1010 = vpop.f32.mrb[0].mxu0
        %1011 = vmatprep.mubr.f32.mxu0 0.0
        %1012 = vmatmul.mubr.f32.gmra.mrb[0].mxu0 %v876
        %v1013 = vpop.f32.mrb[0].mxu0
        %v1014 = vadd.f32 %v838, %v1013
        %v1015 = vpop.f32.mrb[0].mxu0
        %1016 = vmatprep.mubr.f32.mxu0 0.0
        %1017 = vmatmul.mubr.f32.gmra.mrb[0].mxu0 %v879
        %v1018 = vpop.f32.mrb[0].mxu0
        %v1019 = vadd.f32 %v838, %v1018
        %v1020 = vpop.f32.mrb[0].mxu0
        %1021 = vmatprep.mubr.f32.mxu0 0.0
        %1022 = vmatmul.mubr.f32.gmra.mrb[0].mxu0 %v882
        %v1023 = vpop.f32.mrb[0].mxu0
        %v1024 = vadd.f32 %v838, %v1023
        %v1025 = vpop.f32.mrb[0].mxu0
        %1026 = vmatprep.mubr.f32.mxu0 0.0
        %1027 = vmatmul.mubr.f32.gmra.mrb[0].mxu0 %v885
        %v1028 = vpop.f32.mrb[0].mxu0
        %v1029 = vadd.f32 %v838, %v1028
        %v1030 = vpop.f32.mrb[0].mxu0
        %1031 = vdwg.mxu0
        %v1032 = vmax.f32 %v954, 0.0
        %v1033 = vmax.f32 %v959, 0.0
        %v1034 = vmax.f32 %v964, 0.0
        %v1035 = vmax.f32 %v969, 0.0
        %v1036 = vmax.f32 %v974, 0.0
        %v1037 = vmax.f32 %v979, 0.0
        %v1038 = vmax.f32 %v984, 0.0
        %v1039 = vmax.f32 %v989, 0.0
        %v1040 = vmax.f32 %v994, 0.0
        %v1041 = vmax.f32 %v999, 0.0
        %v1042 = vmax.f32 %v1004, 0.0
        %v1043 = vmax.f32 %v1009, 0.0
        %v1044 = vmax.f32 %v1014, 0.0
        %v1045 = vmax.f32 %v1019, 0.0
        %v1046 = vmax.f32 %v1024, 0.0
        %v1047 = vmax.f32 %v1029, 0.0
        %v1048 = vld [vmem:[%s1 + $0x60] sm:$0xff]
        %v1049 = vld [vmem:[%s1 + $0x68] sm:$0xff]
        %v1050 = vld [vmem:[%s1 + $0x70] sm:$0x1]
        %v1051 = vlaneseq
        %v1052 = vshrl.u32 %v1051, 7
        %v1053 = vsub.s32 0, %v1052
        %v1054 = vrot.slane %v1050, %v1053
        %v1056 = vsel %vm407, %v1032, 0
        %v1059 = vsel %vm407, %v1033, 0
        %v1062 = vsel %vm407, %v1034, 0
        %v1065 = vsel %vm407, %v1035, 0
        %v1068 = vsel %vm407, %v1036, 0
        %v1071 = vsel %vm407, %v1037, 0
        %v1074 = vsel %vm407, %v1038, 0
        %v1077 = vsel %vm407, %v1039, 0
        %v1080 = vsel %vm407, %v1040, 0
        %v1083 = vsel %vm407, %v1041, 0
        %v1086 = vsel %vm407, %v1042, 0
        %v1089 = vsel %vm407, %v1043, 0
        %v1092 = vsel %vm407, %v1044, 0
        %v1095 = vsel %vm407, %v1045, 0
        %v1098 = vsel %vm407, %v1046, 0
        %v1101 = vsel %vm407, %v1047, 0
        %1103 = vmatprep.subr.mxu0 0.0
        %1104 = vmatpush1.msra.mxu0 %v1048
        %1105 = vmatprep.subr.mxu0 0.0
        %1106 = vmatpush1.msra.mxu0 %v1049
        %1107 = vmatprep.subr.mxu0 0.0
        %1108 = vmatpush1.msra.mxu0 0.0
        %1109 = vmatprep.subr.mxu0 0.0
        %1110 = vmatpush1.msra.mxu0 0.0
        %1111 = vmatprep.subr.mxu0 0.0
        %1112 = vmatpush1.msra.mxu0 0.0
        %1113 = vmatprep.subr.mxu0 0.0
        %1114 = vmatpush1.msra.mxu0 0.0
        %1115 = vmatprep.subr.mxu0 0.0
        %1116 = vmatpush1.msra.mxu0 0.0
        %1117 = vmatprep.subr.mxu0 0.0
        %1118 = vmatpush1.msra.mxu0 0.0
        %1119 = vmatprep.subr.mxu0 0.0
        %1120 = vmatpush1.msra.mxu0 0.0
        %1121 = vmatprep.subr.mxu0 0.0
        %1122 = vmatpush1.msra.mxu0 0.0
        %1123 = vmatprep.subr.mxu0 0.0
        %1124 = vmatpush1.msra.mxu0 0.0
        %1125 = vmatprep.subr.mxu0 0.0
        %1126 = vmatpush1.msra.mxu0 0.0
        %1127 = vmatprep.subr.mxu0 0.0
        %1128 = vmatpush1.msra.mxu0 0.0
        %1129 = vmatprep.subr.mxu0 0.0
        %1130 = vmatpush1.msra.mxu0 0.0
        %1131 = vmatprep.subr.mxu0 0.0
        %1132 = vmatpush1.msra.mxu0 0.0
        %1133 = vmatprep.subr.mxu0 0.0
        %1134 = vmatpush1.msra.mxu0 0.0
        %1135 = vmatprep.subr.mxu0 0.0
        %1136 = vmatpush1.msra.mxu0 0.0
        %1137 = vmatprep.subr.mxu0 0.0
        %1138 = vmatpush1.msra.mxu0 0.0
        %1139 = vmatprep.subr.mxu0 0.0
        %1140 = vmatpush1.msra.mxu0 0.0
        %1141 = vmatprep.subr.mxu0 0.0
        %1142 = vmatpush1.msra.mxu0 0.0
        %1143 = vmatprep.subr.mxu0 0.0
        %1144 = vmatpush1.msra.mxu0 0.0
        %1145 = vmatprep.subr.mxu0 0.0
        %1146 = vmatpush1.msra.mxu0 0.0
        %1147 = vmatprep.subr.mxu0 0.0
        %1148 = vmatpush1.msra.mxu0 0.0
        %1149 = vmatprep.subr.mxu0 0.0
        %1150 = vmatpush1.msra.mxu0 0.0
        %1151 = vmatprep.subr.mxu0 0.0
        %1152 = vmatpush1.msra.mxu0 0.0
        %1153 = vmatprep.subr.mxu0 0.0
        %1154 = vmatpush1.msra.mxu0 0.0
        %1155 = vmatprep.subr.mxu0 0.0
        %1156 = vmatpush1.msra.mxu0 0.0
        %1157 = vmatprep.subr.mxu0 0.0
        %1158 = vmatpush1.msra.mxu0 0.0
        %1159 = vmatprep.subr.mxu0 0.0
        %1160 = vmatpush1.msra.mxu0 0.0
        %1161 = vmatprep.subr.mxu0 0.0
        %1162 = vmatpush1.msra.mxu0 0.0
        %1163 = vmatprep.subr.mxu0 0.0
        %1164 = vmatpush1.msra.mxu0 0.0
        %1165 = vmatprep.subr.mxu0 0.0
        %1166 = vmatpush1.msra.mxu0 0.0
        %1167 = vmatprep.mubr.f32.mxu0 0.0
        %1168 = vmatmul.mubr.f32.gmra.mrb[0].mxu0 %v1056
        %v1169 = vpop.f32.mrb[0].mxu0
        %v1170 = vadd.f32 %v1054, %v1169
        %v1171 = vpop.f32.mrb[0].mxu0
        %1172 = vmatprep.mubr.f32.mxu0 0.0
        %1173 = vmatmul.mubr.f32.gmra.mrb[0].mxu0 %v1059
        %v1174 = vpop.f32.mrb[0].mxu0
        %v1175 = vadd.f32 %v1054, %v1174
        %v1176 = vpop.f32.mrb[0].mxu0
        %1177 = vmatprep.mubr.f32.mxu0 0.0
        %1178 = vmatmul.mubr.f32.gmra.mrb[0].mxu0 %v1062
        %v1179 = vpop.f32.mrb[0].mxu0
        %v1180 = vadd.f32 %v1054, %v1179
        %v1181 = vpop.f32.mrb[0].mxu0
        %1182 = vmatprep.mubr.f32.mxu0 0.0
        %1183 = vmatmul.mubr.f32.gmra.mrb[0].mxu0 %v1065
        %v1184 = vpop.f32.mrb[0].mxu0
        %v1185 = vadd.f32 %v1054, %v1184
        %v1186 = vpop.f32.mrb[0].mxu0
        %1187 = vmatprep.mubr.f32.mxu0 0.0
        %1188 = vmatmul.mubr.f32.gmra.mrb[0].mxu0 %v1068
        %v1189 = vpop.f32.mrb[0].mxu0
        %v1190 = vadd.f32 %v1054, %v1189
        %v1191 = vpop.f32.mrb[0].mxu0
        %1192 = vmatprep.mubr.f32.mxu0 0.0
        %1193 = vmatmul.mubr.f32.gmra.mrb[0].mxu0 %v1071
        %v1194 = vpop.f32.mrb[0].mxu0
        %v1195 = vadd.f32 %v1054, %v1194
        %v1196 = vpop.f32.mrb[0].mxu0
        %1197 = vmatprep.mubr.f32.mxu0 0.0
        %1198 = vmatmul.mubr.f32.gmra.mrb[0].mxu0 %v1074
        %v1199 = vpop.f32.mrb[0].mxu0
        %v1200 = vadd.f32 %v1054, %v1199
        %v1201 = vpop.f32.mrb[0].mxu0
        %1202 = vmatprep.mubr.f32.mxu0 0.0
        %1203 = vmatmul.mubr.f32.gmra.mrb[0].mxu0 %v1077
        %v1204 = vpop.f32.mrb[0].mxu0
        %v1205 = vadd.f32 %v1054, %v1204
        %v1206 = vpop.f32.mrb[0].mxu0
        %1207 = vmatprep.mubr.f32.mxu0 0.0
        %1208 = vmatmul.mubr.f32.gmra.mrb[0].mxu0 %v1080
        %v1209 = vpop.f32.mrb[0].mxu0
        %v1210 = vadd.f32 %v1054, %v1209
        %v1211 = vpop.f32.mrb[0].mxu0
        %1212 = vmatprep.mubr.f32.mxu0 0.0
        %1213 = vmatmul.mubr.f32.gmra.mrb[0].mxu0 %v1083
        %v1214 = vpop.f32.mrb[0].mxu0
        %v1215 = vadd.f32 %v1054, %v1214
        %v1216 = vpop.f32.mrb[0].mxu0
        %1217 = vmatprep.mubr.f32.mxu0 0.0
        %1218 = vmatmul.mubr.f32.gmra.mrb[0].mxu0 %v1086
        %v1219 = vpop.f32.mrb[0].mxu0
        %v1220 = vadd.f32 %v1054, %v1219
        %v1221 = vpop.f32.mrb[0].mxu0
        %1222 = vmatprep.mubr.f32.mxu0 0.0
        %1223 = vmatmul.mubr.f32.gmra.mrb[0].mxu0 %v1089
        %v1224 = vpop.f32.mrb[0].mxu0
        %v1225 = vadd.f32 %v1054, %v1224
        %v1226 = vpop.f32.mrb[0].mxu0
        %1227 = vmatprep.mubr.f32.mxu0 0.0
        %1228 = vmatmul.mubr.f32.gmra.mrb[0].mxu0 %v1092
        %v1229 = vpop.f32.mrb[0].mxu0
        %v1230 = vadd.f32 %v1054, %v1229
        %v1231 = vpop.f32.mrb[0].mxu0
        %1232 = vmatprep.mubr.f32.mxu0 0.0
        %1233 = vmatmul.mubr.f32.gmra.mrb[0].mxu0 %v1095
        %v1234 = vpop.f32.mrb[0].mxu0
        %v1235 = vadd.f32 %v1054, %v1234
        %v1236 = vpop.f32.mrb[0].mxu0
        %1237 = vmatprep.mubr.f32.mxu0 0.0
        %1238 = vmatmul.mubr.f32.gmra.mrb[0].mxu0 %v1098
        %v1239 = vpop.f32.mrb[0].mxu0
        %v1240 = vadd.f32 %v1054, %v1239
        %v1241 = vpop.f32.mrb[0].mxu0
        %1242 = vmatprep.mubr.f32.mxu0 0.0
        %1243 = vmatmul.mubr.f32.gmra.mrb[0].mxu0 %v1101
        %v1244 = vpop.f32.mrb[0].mxu0
        %v1245 = vadd.f32 %v1054, %v1244
        %v1246 = vpop.f32.mrb[0].mxu0
        %1247 = vdwg.mxu0
        %1248 = vst.msk [vmem:[%s145] sm:$0xff] %vm190, %v1170
        %1249 = vst.msk [vmem:[%s145 + $0x8] sm:$0xff] %vm190, %v1175
        %1250 = vst.msk [vmem:[%s145 + $0x10] sm:$0xff] %vm190, %v1180
        %1251 = vst.msk [vmem:[%s145 + $0x18] sm:$0xff] %vm190, %v1185
        %1252 = vst.msk [vmem:[%s145 + $0x20] sm:$0xff] %vm190, %v1190
        %1253 = vst.msk [vmem:[%s145 + $0x28] sm:$0xff] %vm190, %v1195
        %1254 = vst.msk [vmem:[%s145 + $0x30] sm:$0xff] %vm190, %v1200
        %1255 = vst.msk [vmem:[%s145 + $0x38] sm:$0xff] %vm190, %v1205
        %1256 = vst.msk [vmem:[%s145 + $0x40] sm:$0xff] %vm190, %v1210
        %1257 = vst.msk [vmem:[%s145 + $0x48] sm:$0xff] %vm190, %v1215
        %1258 = vst.msk [vmem:[%s145 + $0x50] sm:$0xff] %vm190, %v1220
        %1259 = vst.msk [vmem:[%s145 + $0x58] sm:$0xff] %vm190, %v1225
        %1260 = vst.msk [vmem:[%s145 + $0x60] sm:$0xff] %vm190, %v1230
        %1261 = vst.msk [vmem:[%s145 + $0x68] sm:$0xff] %vm190, %v1235
        %1262 = vst.msk [vmem:[%s145 + $0x70] sm:$0xff] %vm190, %v1240
        %1263 = vst.msk [vmem:[%s145 + $0x78] sm:$0xff] %vm190, %v1245
        %s1264 = sand.u32 %s68, 1
        %s1265 = sand.u32 %s68, 1
        %s1266 = smul.addr %s1265, 128
        %s1267 = scalar_lea.vmem [#allocation2], %s1266
        // Predicated region
        $region29: #{_forward.1} parent=27 // pred_check
          %p1268 = pneg %p78
        $region30: #{_forward.1} parent=27 // pred_check_branch
          %1270 = sbr.rel (%p1268) target = $region32
        $region31: #{_forward.1} parent=27 // pred_region
          %s1271 = smul.u32 16, %s13
          %s1272 = ssub.s32 38, %s1271
          %p1273 = scmp.lt.s32.totalorder %s1272, 16
          %s1274 = scalar_select %p1273, %s1272, 16
          %s1275 = smul.u32 128, %s1274
          %p1276 = scmp.ne.s32.totalorder 0, %s1275
          %s1277 = smul.addr %s1271, 8
          %s1278 = scalar_lea.vmem %s2, %s1277
          // Predicated region
          $region33: #{_forward.1} parent=31 // pred_check
            %p1279 = pneg %p1276
          $region34: #{_forward.1} parent=31 // pred_check_branch
            %1281 = sbr.rel (%p1279) target = $region36
          $region35: #{_forward.1} parent=31 // pred_region
            // Predicated region
            $region37: #{_forward.1} parent=35 // pred_check
              _
            $region38: #{_forward.1} parent=35 // pred_check_branch
              %1283 = sbr.rel (0) target = $region40
            $region39: #{_forward.1} parent=35 // pred_region
              // Predicated region
              $region59: #{_forward.1} parent=39 // pred_check
                _
              $region60: #{_forward.1} parent=39 // pred_check_branch
                %1362 = sbr.rel (0) target = $region62
              $region61: #{_forward.1} parent=39 // pred_region
                %s1363 = sshrl.u32 %s1274, 4
                // While loop
                $region63: #{_forward.1} parent=61 // loop_pre_header
                  _
                $region64: #{_forward.1} parent=61 // loop_header
                  %s1365 = sphi 0, %s1367
                  %p1366 = scmp.ge.s32.totalorder %s1365, %s1363
                  %s1370 = sphi 0, %s1407
                  %s1371 = sphi %s1267, %s1410
                  %s1372 = sphi %s1278, %s1411
                $region65: #{_forward.1} parent=61 // loop_header_branch
                  %1369 = sbr.rel (%p1366) target = $region69
                $region66: #{_forward.1} parent=61 // loop_body
                  %v1373 = vld [vmem:[%s1371] sm:$0xff]
                  %1374 = vst [vmem:[%s1372] sm:$0xff] %v1373
                  %v1375 = vld [vmem:[%s1371 + $0x8] sm:$0xff]
                  %1376 = vst [vmem:[%s1372 + $0x8] sm:$0xff] %v1375
                  %v1377 = vld [vmem:[%s1371 + $0x10] sm:$0xff]
                  %1378 = vst [vmem:[%s1372 + $0x10] sm:$0xff] %v1377
                  %v1379 = vld [vmem:[%s1371 + $0x18] sm:$0xff]
                  %1380 = vst [vmem:[%s1372 + $0x18] sm:$0xff] %v1379
                  %v1381 = vld [vmem:[%s1371 + $0x20] sm:$0xff]
                  %1382 = vst [vmem:[%s1372 + $0x20] sm:$0xff] %v1381
                  %v1383 = vld [vmem:[%s1371 + $0x28] sm:$0xff]
                  %1384 = vst [vmem:[%s1372 + $0x28] sm:$0xff] %v1383
                  %v1385 = vld [vmem:[%s1371 + $0x30] sm:$0xff]
                  %1386 = vst [vmem:[%s1372 + $0x30] sm:$0xff] %v1385
                  %v1387 = vld [vmem:[%s1371 + $0x38] sm:$0xff]
                  %1388 = vst [vmem:[%s1372 + $0x38] sm:$0xff] %v1387
                  %v1389 = vld [vmem:[%s1371 + $0x40] sm:$0xff]
                  %1390 = vst [vmem:[%s1372 + $0x40] sm:$0xff] %v1389
                  %v1391 = vld [vmem:[%s1371 + $0x48] sm:$0xff]
                  %1392 = vst [vmem:[%s1372 + $0x48] sm:$0xff] %v1391
                  %v1393 = vld [vmem:[%s1371 + $0x50] sm:$0xff]
                  %1394 = vst [vmem:[%s1372 + $0x50] sm:$0xff] %v1393
                  %v1395 = vld [vmem:[%s1371 + $0x58] sm:$0xff]
                  %1396 = vst [vmem:[%s1372 + $0x58] sm:$0xff] %v1395
                  %v1397 = vld [vmem:[%s1371 + $0x60] sm:$0xff]
                  %1398 = vst [vmem:[%s1372 + $0x60] sm:$0xff] %v1397
                  %v1399 = vld [vmem:[%s1371 + $0x68] sm:$0xff]
                  %1400 = vst [vmem:[%s1372 + $0x68] sm:$0xff] %v1399
                  %v1401 = vld [vmem:[%s1371 + $0x70] sm:$0xff]
                  %1402 = vst [vmem:[%s1372 + $0x70] sm:$0xff] %v1401
                  %v1403 = vld [vmem:[%s1371 + $0x78] sm:$0xff]
                  %1404 = vst [vmem:[%s1372 + $0x78] sm:$0xff] %v1403
                  %s1405 = sadd.s32 1, %s1370
                  %p1406 = scmp.ge.s32.totalorder %s1405, %s1363
                  %s1407 = scalar_select %p1406, 0, %s1405
                  %s1408 = smul.u32 %s1407, 128
                  %s1409 = smul.u32 %s1407, 128
                  %s1410 = scalar_lea.vmem %s1267, %s1408 [#allocation2]
                  %s1411 = scalar_lea.vmem %s1278, %s1409
                $region67: #{_forward.1} parent=61 // loop_footer
                  %s1367 = sadd.s32 %s1365, 1
                $region68: #{_forward.1} parent=61 // loop_footer_branch
                  %1364 = sbr.rel target = $region64
                $region69: #{_forward.1} parent=61 // loop_exit
                  _
                %s1412 = sshrl.u32 %s1274, 4
                %s1413 = sand.u32 %s1274, 15
                %s1414 = smul.u32 %s1412, 16
                %s1415 = smul.u32 8, %s1414
                %s1416 = scalar_lea.vmem %s1267, %s1415 [#allocation2]
                %s1417 = smul.u32 8, %s1414
                %s1418 = scalar_lea.vmem %s1278, %s1417
                // While loop
                $region70: #{_forward.1} parent=61 // loop_pre_header
                  _
                $region71: #{_forward.1} parent=61 // loop_header
                  %s1420 = sphi 0, %s1422
                  %p1421 = scmp.ge.s32.totalorder %s1420, %s1413
                  %s1425 = sphi 0, %s1432
                  %s1426 = sphi %s1416, %s1435
                  %s1427 = sphi %s1418, %s1436
                $region72: #{_forward.1} parent=61 // loop_header_branch
                  %1424 = sbr.rel (%p1421) target = $region76
                $region73: #{_forward.1} parent=61 // loop_body
                  %v1428 = vld [vmem:[%s1426] sm:$0xff]
                  %1429 = vst [vmem:[%s1427] sm:$0xff] %v1428
                  %s1430 = sadd.s32 1, %s1425
                  %p1431 = scmp.ge.s32.totalorder %s1430, %s1413
                  %s1432 = scalar_select %p1431, 0, %s1430
                  %s1433 = smul.u32 %s1432, 8
                  %s1434 = smul.u32 %s1432, 8
                  %s1435 = scalar_lea.vmem %s1416, %s1433 [#allocation2]
                  %s1436 = scalar_lea.vmem %s1418, %s1434
                $region74: #{_forward.1} parent=61 // loop_footer
                  %s1422 = sadd.s32 %s1420, 1
                $region75: #{_forward.1} parent=61 // loop_footer_branch
                  %1419 = sbr.rel target = $region71
                $region76: #{_forward.1} parent=61 // loop_exit
                  _
              $region62: #{_forward.1} parent=39 // pred_fallthru
                _
              // Predicated region
              $region77: #{_forward.1} parent=39 // pred_check
                _
              $region78: #{_forward.1} parent=39 // pred_check_branch
                %1438 = sbr.rel target = $region80
              $region79: #{_forward.1} parent=39 // pred_region
                _
              $region80: #{_forward.1} parent=39 // pred_fallthru
                _
            $region40: #{_forward.1} parent=35 // pred_fallthru
              _
            // Predicated region
            $region41: #{_forward.1} parent=35 // pred_check
              _
            $region42: #{_forward.1} parent=35 // pred_check_branch
              %1285 = sbr.rel target = $region44
            $region43: #{_forward.1} parent=35 // pred_region
              %s1287 = sshrl.u32 %s1274, 4
              // While loop
              $region45: #{_forward.1} parent=43 // loop_pre_header
                _
              $region46: #{_forward.1} parent=43 // loop_header
                %s1289 = sphi 0, %s1291
                %p1290 = scmp.ge.s32.totalorder %s1289, %s1287
                %s1294 = sphi 0, %s1331
                %s1295 = sphi %s1267, %s1334
                %s1296 = sphi %s1278, %s1335
              $region47: #{_forward.1} parent=43 // loop_header_branch
                %1293 = sbr.rel (%p1290) target = $region51
              $region48: #{_forward.1} parent=43 // loop_body
                %v1297 = vld [vmem:[%s1295] sm:$0xff]
                %1298 = vst [vmem:[%s1296] sm:$0xff] %v1297
                %v1299 = vld [vmem:[%s1295 + $0x8] sm:$0xff]
                %1300 = vst [vmem:[%s1296 + $0x8] sm:$0xff] %v1299
                %v1301 = vld [vmem:[%s1295 + $0x10] sm:$0xff]
                %1302 = vst [vmem:[%s1296 + $0x10] sm:$0xff] %v1301
                %v1303 = vld [vmem:[%s1295 + $0x18] sm:$0xff]
                %1304 = vst [vmem:[%s1296 + $0x18] sm:$0xff] %v1303
                %v1305 = vld [vmem:[%s1295 + $0x20] sm:$0xff]
                %1306 = vst [vmem:[%s1296 + $0x20] sm:$0xff] %v1305
                %v1307 = vld [vmem:[%s1295 + $0x28] sm:$0xff]
                %1308 = vst [vmem:[%s1296 + $0x28] sm:$0xff] %v1307
                %v1309 = vld [vmem:[%s1295 + $0x30] sm:$0xff]
                %1310 = vst [vmem:[%s1296 + $0x30] sm:$0xff] %v1309
                %v1311 = vld [vmem:[%s1295 + $0x38] sm:$0xff]
                %1312 = vst [vmem:[%s1296 + $0x38] sm:$0xff] %v1311
                %v1313 = vld [vmem:[%s1295 + $0x40] sm:$0xff]
                %1314 = vst [vmem:[%s1296 + $0x40] sm:$0xff] %v1313
                %v1315 = vld [vmem:[%s1295 + $0x48] sm:$0xff]
                %1316 = vst [vmem:[%s1296 + $0x48] sm:$0xff] %v1315
                %v1317 = vld [vmem:[%s1295 + $0x50] sm:$0xff]
                %1318 = vst [vmem:[%s1296 + $0x50] sm:$0xff] %v1317
                %v1319 = vld [vmem:[%s1295 + $0x58] sm:$0xff]
                %1320 = vst [vmem:[%s1296 + $0x58] sm:$0xff] %v1319
                %v1321 = vld [vmem:[%s1295 + $0x60] sm:$0xff]
                %1322 = vst [vmem:[%s1296 + $0x60] sm:$0xff] %v1321
                %v1323 = vld [vmem:[%s1295 + $0x68] sm:$0xff]
                %1324 = vst [vmem:[%s1296 + $0x68] sm:$0xff] %v1323
                %v1325 = vld [vmem:[%s1295 + $0x70] sm:$0xff]
                %1326 = vst [vmem:[%s1296 + $0x70] sm:$0xff] %v1325
                %v1327 = vld [vmem:[%s1295 + $0x78] sm:$0xff]
                %1328 = vst [vmem:[%s1296 + $0x78] sm:$0xff] %v1327
                %s1329 = sadd.s32 1, %s1294
                %p1330 = scmp.ge.s32.totalorder %s1329, %s1287
                %s1331 = scalar_select %p1330, 0, %s1329
                %s1332 = smul.u32 %s1331, 128
                %s1333 = smul.u32 %s1331, 128
                %s1334 = scalar_lea.vmem %s1267, %s1332 [#allocation2]
                %s1335 = scalar_lea.vmem %s1278, %s1333
              $region49: #{_forward.1} parent=43 // loop_footer
                %s1291 = sadd.s32 %s1289, 1
              $region50: #{_forward.1} parent=43 // loop_footer_branch
                %1288 = sbr.rel target = $region46
              $region51: #{_forward.1} parent=43 // loop_exit
                _
              %s1336 = sshrl.u32 %s1274, 4
              %s1337 = sand.u32 %s1274, 15
              %s1338 = smul.u32 %s1336, 16
              %s1339 = smul.u32 8, %s1338
              %s1340 = scalar_lea.vmem %s1267, %s1339 [#allocation2]
              %s1341 = smul.u32 8, %s1338
              %s1342 = scalar_lea.vmem %s1278, %s1341
              // While loop
              $region52: #{_forward.1} parent=43 // loop_pre_header
                _
              $region53: #{_forward.1} parent=43 // loop_header
                %s1344 = sphi 0, %s1346
                %p1345 = scmp.ge.s32.totalorder %s1344, %s1337
                %s1349 = sphi 0, %s1356
                %s1350 = sphi %s1340, %s1359
                %s1351 = sphi %s1342, %s1360
              $region54: #{_forward.1} parent=43 // loop_header_branch
                %1348 = sbr.rel (%p1345) target = $region58
              $region55: #{_forward.1} parent=43 // loop_body
                %v1352 = vld [vmem:[%s1350] sm:$0xff]
                %1353 = vst [vmem:[%s1351] sm:$0xff] %v1352
                %s1354 = sadd.s32 1, %s1349
                %p1355 = scmp.ge.s32.totalorder %s1354, %s1337
                %s1356 = scalar_select %p1355, 0, %s1354
                %s1357 = smul.u32 %s1356, 8
                %s1358 = smul.u32 %s1356, 8
                %s1359 = scalar_lea.vmem %s1340, %s1357 [#allocation2]
                %s1360 = scalar_lea.vmem %s1342, %s1358
              $region56: #{_forward.1} parent=43 // loop_footer
                %s1346 = sadd.s32 %s1344, 1
              $region57: #{_forward.1} parent=43 // loop_footer_branch
                %1343 = sbr.rel target = $region53
              $region58: #{_forward.1} parent=43 // loop_exit
                _
            $region44: #{_forward.1} parent=35 // pred_fallthru
              _
          $region36: #{_forward.1} parent=31 // pred_fallthru
            _
          %1439 = vnop
        $region32: #{_forward.1} parent=27 // pred_fallthru
          _
      $region28: #{_forward.1} parent=5 // pred_fallthru
        _
      %p1440 = scmp.le.s32.totalorder 2, %s8
      // Predicated region
      $region81: #{_forward.1} parent=5 // pred_check
        %p1441 = pneg %p1440
      $region82: #{_forward.1} parent=5 // pred_check_branch
        %1443 = sbr.rel (%p1441) target = $region84
      $region83: #{_forward.1} parent=5 // pred_region
        %s1444 = ssub.s32 %s8, 2
        // Predicated region
        $region85: #{_forward.1} parent=83 // pred_check
          %p1445 = pneg %p84
        $region86: #{_forward.1} parent=83 // pred_check_branch
          %1447 = sbr.rel (%p1445) target = $region88
        $region87: #{_forward.1} parent=83 // pred_region
          %s1448 = sand.u32 %s69, 1
          %s1449 = sand.u32 %s69, 1
          %s1450 = smul.addr %s1449, 128
          %s1451 = scalar_lea.vmem [#allocation2], %s1450
        $region88: #{_forward.1} parent=83 // pred_fallthru
          _
      $region84: #{_forward.1} parent=5 // pred_fallthru
        _
    $region6: #{_forward.1} parent=1 // loop_footer
      %s12 = sadd.s32 1, %s8
    $region7: #{_forward.1} parent=1 // loop_footer_branch
      %7 = sbr.rel target = $region3
    $region8: #{_forward.1} parent=1 // loop_exit
      _

</llo_original>
